<compile_context>
chip_gen: v7x
topology: tpu7x:2x2x1
jax: 0.10.0
libtpu: 0.0.40
codegen_flags: <defaults>
</compile_context>

<pallas_src>
import jax
import jax.numpy as jnp
from jax.experimental import pallas as pl
from jax.experimental.pallas import tpu as pltpu


def _deep_mlp_kernel(xT_ref, w1T_ref, b1_ref, w2T_ref, b2_ref, w3_ref, b3_ref,
                     out_ref):
    # Shapes (per grid step):
    #   xT_ref  : (D,  TILE_B)  bf16   batch on the lane axis
    #   w1T_ref : (H1, D)       bf16
    #   b1_ref  : (H1, 1)       f32
    #   w2T_ref : (H2, H1)      bf16
    #   b2_ref  : (H2, 1)       f32
    #   w3_ref  : (H2, 1)       f32
    #   b3_ref  : (1, 1)        f32
    #   out_ref : (1,  TILE_B)  f32    lane-dense logit row
    xT = xT_ref[...]

    # Layer 1: MXU matmul (bf16 in, f32 accumulate) + bias + ReLU in f32.
    h1 = jnp.dot(w1T_ref[...], xT, preferred_element_type=jnp.float32)
    h1 = jnp.maximum(h1 + b1_ref[...], 0.0)

    # Layer 2.
    h2 = jnp.dot(w2T_ref[...], h1.astype(w2T_ref.dtype),
                 preferred_element_type=jnp.float32)
    h2 = jnp.maximum(h2 + b2_ref[...], 0.0)

    # Output head (H2 -> 1): VPU multiply + sublane (XLU) reduction instead of
    # an N=1 MXU matmul; result is already a lane-dense (1, TILE_B) row.
    logit = jnp.sum(h2 * w3_ref[...], axis=0, keepdims=True) + b3_ref[...]
    out_ref[...] = logit.astype(out_ref.dtype)


def deep_tower_pallas(x_deep, params, *, tile_b=32768):
    """Fused deep-tower MLP: returns (B, 1) f32 logits."""
    w1, b1, w2, b2, w3, b3 = params
    B, D = x_deep.shape
    H1 = w1.shape[1]
    H2 = w2.shape[1]

    # ---- batch-tile selection ----------------------------------------------
    b_lanes = pl.cdiv(B, 128) * 128
    tile_b = max(128, (int(tile_b) // 128) * 128)
    # v7x: keep >= ~4 grid steps when B is large so the "parallel" batch axis
    # actually splits across the two TensorCores and still pipelines per TC.
    tile_b = min(tile_b, max(128, (b_lanes // 4) // 128 * 128))
    tile_b = min(tile_b, b_lanes)
    # VMEM budget: 2x bf16 activation buffers ((D, tile) dense on sublanes) +
    # 2x f32 output buffers ((1, tile) pads to 8 sublanes).  Keep under
    # ~24 MiB so it fits every generation (v7x: 64 MiB phys / 32 MiB scoped).
    vmem_budget = 24 * 1024 * 1024
    bytes_per_col = 2 * (D * 2) + 2 * (8 * 4)
    tile_b = min(tile_b, max(128, (vmem_budget // bytes_per_col) // 128 * 128))

    grid = (pl.cdiv(B, tile_b),)

    # ---- wrapper-side layout plumbing (one fused XLA pass, no zero/pad) ----
    x_t = x_deep.T.astype(jnp.bfloat16)             # (D, B) cast+transpose

    w1_t = w1.T.astype(jnp.bfloat16)                # (H1, D)
    w2_t = w2.T.astype(jnp.bfloat16)                # (H2, H1)
    b1_c = b1.reshape(H1, 1).astype(jnp.float32)    # (H1, 1)
    b2_c = b2.reshape(H2, 1).astype(jnp.float32)    # (H2, 1)
    w3_c = w3.reshape(H2, 1).astype(jnp.float32)    # (H2, 1)
    b3_c = b3.reshape(1, 1).astype(jnp.float32)     # (1, 1)

    flops = 2 * B * (D * H1 + H1 * H2 + H2)
    bytes_accessed = (D * B * 2                      # activations (bf16)
                      + (H1 * D + H2 * H1) * 2       # bf16 weights
                      + (H1 + H2 + H2 + 1) * 4       # f32 biases / head
                      + B * 4)                       # f32 output
    cost = pl.CostEstimate(flops=flops, transcendentals=0,
                           bytes_accessed=bytes_accessed)

    def resident(shape):
        # Full-array block, same block every grid step -> stays VMEM-resident.
        return pl.BlockSpec(shape, lambda i: tuple(0 for _ in shape))

    out = pl.pallas_call(
        _deep_mlp_kernel,
        out_shape=jax.ShapeDtypeStruct((1, B), jnp.float32),
        grid=grid,
        in_specs=[
            pl.BlockSpec((D, tile_b), lambda i: (0, i)),   # activations
            resident((H1, D)),
            resident((H1, 1)),
            resident((H2, H1)),
            resident((H2, 1)),
            resident((H2, 1)),
            resident((1, 1)),
        ],
        out_specs=pl.BlockSpec((1, tile_b), lambda i: (0, i)),
        compiler_params=pltpu.CompilerParams(
            dimension_semantics=("parallel",),   # megacore split on v7x
            vmem_limit_bytes=32 * 1024 * 1024,   # load-bearing on v5e (16 MiB default)
        ),
        cost_estimate=cost,
    )(x_t, w1_t, b1_c, w2_t, b2_c, w3_c, b3_c)

    # Back to the reference layout: (B, 1) (pure relabel, no data movement).
    return out.reshape(B, 1)


def deepv2_forward(x_wide, x_deep, params, *, tile_b=32768):
    """Mirrors DeepV2.forward: x_wide is unused; logit returned three times."""
    del x_wide  # unused by the reference forward
    deep_logit = deep_tower_pallas(x_deep, params, tile_b=tile_b)
    return (deep_logit, deep_logit, deep_logit)


def init_params(key, deep_dim, h1=32, h2=16, out_dim=1):
    k1, k2, k3 = jax.random.split(key, 3)
    s1 = 1.0 / jnp.sqrt(deep_dim)
    s2 = 1.0 / jnp.sqrt(h1)
    s3 = 1.0 / jnp.sqrt(h2)
    w1 = jax.random.uniform(k1, (deep_dim, h1), jnp.float32, -s1, s1)
    b1 = jnp.zeros((1, h1), jnp.float32)
    w2 = jax.random.uniform(k2, (h1, h2), jnp.float32, -s2, s2)
    b2 = jnp.zeros((1, h2), jnp.float32)
    w3 = jax.random.uniform(k3, (h2, out_dim), jnp.float32, -s3, s3)
    b3 = jnp.zeros((1, out_dim), jnp.float32)
    return (w1, b1, w2, b2, w3, b3)


if __name__ == "__main__":
    key = jax.random.PRNGKey(0)
    k_wide, k_deep, k_param = jax.random.split(key, 3)

    batch = 300          # non-multiple of 128 -> exercises the ragged last block
    wide_dim = 8
    deep_dim = 16

    x_wide = jax.random.normal(k_wide, (batch, wide_dim), jnp.float32)
    x_deep = jax.random.normal(k_deep, (batch, deep_dim), jnp.float32)
    params = init_params(k_param, deep_dim)

    # Default tile_b=32768 is auto-clamped to 128 for this tiny batch, giving a
    # 3-step pipelined grid; large batches get the big amortizing tiles.
    out1, out2, out3 = deepv2_forward(x_wide, x_deep, params)
    jax.block_until_ready((out1, out2, out3))

    # Pure-JAX reference emulating the kernel's bf16-operand / f32-accumulate
    # matmuls (tight tolerance), plus a loose check vs. the pure f32 tower.
    w1, b1, w2, b2, w3, b3 = params
    xe = x_deep.astype(jnp.bfloat16).astype(jnp.float32)
    w1e = w1.astype(jnp.bfloat16).astype(jnp.float32)
    w2e = w2.astype(jnp.bfloat16).astype(jnp.float32)
    h1r = jnp.maximum(xe @ w1e + b1, 0.0)
    h2r = jnp.maximum(h1r.astype(jnp.bfloat16).astype(jnp.float32) @ w2e + b2, 0.0)
    ref_bf16 = h2r @ w3 + b3

    ref_f32 = jnp.maximum(x_deep @ w1 + b1, 0.0)
    ref_f32 = jnp.maximum(ref_f32 @ w2 + b2, 0.0)
    ref_f32 = ref_f32 @ w3 + b3

    assert out1.shape == (batch, 1)
    assert jnp.allclose(out1, ref_bf16, atol=1e-4, rtol=1e-4)
    assert jnp.allclose(out1, ref_f32, atol=5e-2, rtol=5e-2)
    assert jnp.array_equal(out1, out2) and jnp.array_equal(out1, out3)

    print("KERNEL_OK")
</pallas_src>

<mosaic_0001>
module attributes {stable_mosaic.version = 11 : i64} {
  func.func @_deep_mlp_kernel(%arg0: i32, %arg1: memref<16x128xbf16, #tpu.memory_space<vmem>>, %arg2: memref<32x16xbf16, #tpu.memory_space<vmem>>, %arg3: memref<32x1xf32, #tpu.memory_space<vmem>>, %arg4: memref<16x32xbf16, #tpu.memory_space<vmem>>, %arg5: memref<16x1xf32, #tpu.memory_space<vmem>>, %arg6: memref<16x1xf32, #tpu.memory_space<vmem>>, %arg7: memref<1x1xf32, #tpu.memory_space<vmem>>, %arg8: memref<1x128xf32, #tpu.memory_space<vmem>>) attributes {dimension_semantics = [#tpu.dimension_semantics<parallel>], iteration_bounds = array<i64: 3>, scalar_prefetch = 0 : i64, scratch_operands = 0 : i64, tpu.core_type = #tpu.core_type<tc>, window_params = [{transform_indices = @transform_0, window_bounds = array<i64: 16, 128>}, {pipeline_mode = #tpu.pipeline_mode<synchronous>, transform_indices = @transform_1, window_bounds = array<i64: 32, 16>}, {pipeline_mode = #tpu.pipeline_mode<synchronous>, transform_indices = @transform_2, window_bounds = array<i64: 32, 1>}, {pipeline_mode = #tpu.pipeline_mode<synchronous>, transform_indices = @transform_3, window_bounds = array<i64: 16, 32>}, {pipeline_mode = #tpu.pipeline_mode<synchronous>, transform_indices = @transform_4, window_bounds = array<i64: 16, 1>}, {pipeline_mode = #tpu.pipeline_mode<synchronous>, transform_indices = @transform_5, window_bounds = array<i64: 16, 1>}, {pipeline_mode = #tpu.pipeline_mode<synchronous>, transform_indices = @transform_6, window_bounds = array<i64: 1, 1>}, {transform_indices = @transform_7, window_bounds = array<i64: 1, 128>}]} {
    %c0 = arith.constant 0 : index
    %c0_0 = arith.constant 0 : index
    %0 = vector.load %arg1[%c0, %c0_0] : memref<16x128xbf16, #tpu.memory_space<vmem>>, vector<16x128xbf16>
    %c0_1 = arith.constant 0 : index
    %c0_2 = arith.constant 0 : index
    %1 = vector.load %arg2[%c0_1, %c0_2] : memref<32x16xbf16, #tpu.memory_space<vmem>>, vector<32x16xbf16>
    %cst = arith.constant dense<0.000000e+00> : vector<32x128xf32>
    %2 = tpu.matmul %1, %0, %cst {dimension_numbers = #tpu.dot_dimension_numbers<[1], [0], [0], [1], [0, 0, 1, 1], [], []>} : vector<32x16xbf16>, vector<16x128xbf16>, vector<32x128xf32> -> vector<32x128xf32>
    %c0_3 = arith.constant 0 : index
    %c0_4 = arith.constant 0 : index
    %3 = vector.load %arg3[%c0_3, %c0_4] : memref<32x1xf32, #tpu.memory_space<vmem>>, vector<32x1xf32>
    %4 = vector.broadcast %3 : vector<32x1xf32> to vector<32x128xf32>
    %5 = arith.addf %2, %4 : vector<32x128xf32>
    %cst_5 = arith.constant 0.000000e+00 : f32
    %6 = vector.broadcast %cst_5 : f32 to vector<32x128xf32>
    %7 = arith.maximumf %5, %6 : vector<32x128xf32>
    %c0_6 = arith.constant 0 : index
    %c0_7 = arith.constant 0 : index
    %8 = vector.load %arg4[%c0_6, %c0_7] : memref<16x32xbf16, #tpu.memory_space<vmem>>, vector<16x32xbf16>
    %9 = arith.truncf %7 : vector<32x128xf32> to vector<32x128xbf16>
    %cst_8 = arith.constant dense<0.000000e+00> : vector<16x128xf32>
    %10 = tpu.matmul %8, %9, %cst_8 {dimension_numbers = #tpu.dot_dimension_numbers<[1], [0], [0], [1], [0, 0, 1, 1], [], []>} : vector<16x32xbf16>, vector<32x128xbf16>, vector<16x128xf32> -> vector<16x128xf32>
    %c0_9 = arith.constant 0 : index
    %c0_10 = arith.constant 0 : index
    %11 = vector.load %arg5[%c0_9, %c0_10] : memref<16x1xf32, #tpu.memory_space<vmem>>, vector<16x1xf32>
    %12 = vector.broadcast %11 : vector<16x1xf32> to vector<16x128xf32>
    %13 = arith.addf %10, %12 : vector<16x128xf32>
    %cst_11 = arith.constant 0.000000e+00 : f32
    %14 = vector.broadcast %cst_11 : f32 to vector<16x128xf32>
    %15 = arith.maximumf %13, %14 : vector<16x128xf32>
    %c0_12 = arith.constant 0 : index
    %c0_13 = arith.constant 0 : index
    %16 = vector.load %arg6[%c0_12, %c0_13] : memref<16x1xf32, #tpu.memory_space<vmem>>, vector<16x1xf32>
    %17 = vector.broadcast %16 : vector<16x1xf32> to vector<16x128xf32>
    %18 = arith.mulf %15, %17 : vector<16x128xf32>
    %cst_14 = arith.constant dense<0.000000e+00> : vector<128xf32>
    %19 = vector.multi_reduction <add>, %18, %cst_14 [0] : vector<16x128xf32> to vector<128xf32>
    %20 = vector.shape_cast %19 : vector<128xf32> to vector<1x128xf32>
    %c0_15 = arith.constant 0 : index
    %c0_16 = arith.constant 0 : index
    %21 = vector.load %arg7[%c0_15, %c0_16] : memref<1x1xf32, #tpu.memory_space<vmem>>, vector<1x1xf32>
    %22 = vector.broadcast %21 : vector<1x1xf32> to vector<1x128xf32>
    %23 = arith.addf %20, %22 : vector<1x128xf32>
    %c0_17 = arith.constant 0 : index
    %c0_18 = arith.constant 0 : index
    %24 = vector.load %arg8[%c0_17, %c0_18] : memref<1x128xf32, #tpu.memory_space<vmem>>, vector<1x128xf32>
    tpu.vector_store %arg8[%c0_17, %c0_18], %23 {strides = array<i32>} : memref<1x128xf32, #tpu.memory_space<vmem>>, vector<1x128xf32>,
    return
  }
  func.func @transform_0(%arg0: i32) -> (i32, i32) {
    %c0_i32 = arith.constant 0 : i32
    %c0_i32_0 = arith.constant 0 : i32
    return %c0_i32, %arg0 : i32, i32
  }
  func.func @transform_1(%arg0: i32) -> (i32, i32) {
    %c0_i32 = arith.constant 0 : i32
    %c0_i32_0 = arith.constant 0 : i32
    %c0_i32_1 = arith.constant 0 : i32
    return %c0_i32, %c0_i32_0 : i32, i32
  }
  func.func @transform_2(%arg0: i32) -> (i32, i32) {
    %c0_i32 = arith.constant 0 : i32
    %c0_i32_0 = arith.constant 0 : i32
    %c0_i32_1 = arith.constant 0 : i32
    return %c0_i32, %c0_i32_0 : i32, i32
  }
  func.func @transform_3(%arg0: i32) -> (i32, i32) {
    %c0_i32 = arith.constant 0 : i32
    %c0_i32_0 = arith.constant 0 : i32
    %c0_i32_1 = arith.constant 0 : i32
    return %c0_i32, %c0_i32_0 : i32, i32
  }
  func.func @transform_4(%arg0: i32) -> (i32, i32) {
    %c0_i32 = arith.constant 0 : i32
    %c0_i32_0 = arith.constant 0 : i32
    %c0_i32_1 = arith.constant 0 : i32
    return %c0_i32, %c0_i32_0 : i32, i32
  }
  func.func @transform_5(%arg0: i32) -> (i32, i32) {
    %c0_i32 = arith.constant 0 : i32
    %c0_i32_0 = arith.constant 0 : i32
    %c0_i32_1 = arith.constant 0 : i32
    return %c0_i32, %c0_i32_0 : i32, i32
  }
  func.func @transform_6(%arg0: i32) -> (i32, i32) {
    %c0_i32 = arith.constant 0 : i32
    %c0_i32_0 = arith.constant 0 : i32
    %c0_i32_1 = arith.constant 0 : i32
    return %c0_i32, %c0_i32_0 : i32, i32
  }
  func.func @transform_7(%arg0: i32) -> (i32, i32) {
    %c0_i32 = arith.constant 0 : i32
    %c0_i32_0 = arith.constant 0 : i32
    return %c0_i32, %arg0 : i32, i32
  }
}

</mosaic_0001>

<llo_original>
// kernel: tpu_custom_call.1
$region0: #{tpu_custom_call.1}
  #allocation0 [shape = 'u32[]', space=smem, size = 0x4, offset = 0x4, fixed_abs, tag = 'smem constant byte address 0x4 - core index']
  #allocation1 [shape = 'u32[144,128]{1,0:T(1,128)}', space=vmem, size = 0x12000, scoped, tag = 'internal scratch']
  #allocation2 [shape = 'f32[1,1]{1,0:T(1,128)S(1)}', space=vmem, size = 0x200, scoped, tag = 'scoped memory for tpu_custom_call.1']
  %s0 = inlined_call_operand.vmem [shape: bf16[16,300], index: 0, kind: input, shape index: {}]
  %s1 = inlined_call_operand.vmem [shape: bf16[32,16], index: 1, kind: input, shape index: {}]
  %s2 = inlined_call_operand.vmem [shape: f32[32,1], index: 2, kind: input, shape index: {}]
  %s3 = inlined_call_operand.vmem [shape: bf16[16,32], index: 3, kind: input, shape index: {}]
  %s4 = inlined_call_operand.vmem [shape: f32[16,1], index: 4, kind: input, shape index: {}]
  %s5 = inlined_call_operand.vmem [shape: f32[16,1], index: 5, kind: input, shape index: {}]
  %s6 = inlined_call_operand.<no memory space> [shape: f32[1,1], index: 6, kind: input, shape index: {}]
  %s7 = inlined_call_operand.hbm [shape: f32[1,300], index: 7, kind: output, shape index: {}]
  %s8 = sld [smem:[#allocation0]]
  $region102: #{tpu_custom_call.1} parent=0
    _
  %s10 = ssub.s32 1, %s8
  %s11 = scalar_select 0, %s10, %s8
  %v12 = vstv %s6
  %13 = vst [vmem:[#allocation2] sm:$0x1] %v12
  $region1: #{tpu_custom_call.1} parent=0
    #allocation3 [shape = 'u8[8192]{0}', space=vmem, size = 0x2000, scoped, tag = 'input window, operand 0']
    #allocation4 [shape = 'u8[1024]{0}', space=vmem, size = 0x400, scoped, tag = 'output window, operand 0']
    #allocation5 [shape = 's32[2]{0}', space=sflag, size = 0x8, scoped, tag = 'scoped memory for tpu_custom_call.1']
    %14 = vsyncpa [#allocation5], 0
    %s15 = scalar_lea.sflag [#allocation5], 1
    %16 = vsyncpa %s15, 0
    loop: start=0, step=1, limit=5
    $region2: #{tpu_custom_call.1} parent=1 // loop_pre_header
      _
    $region3: #{tpu_custom_call.1} parent=1 // loop_header
      %s18 = sphi 0, %s22
      %p19 = scmp.ge.s32.totalorder %s18, 5
      %s28 = sphi 0, %s30
      %s31 = sphi 0, %s28
      %s32 = sphi 0, %s31
      %s48 = sphi 0, %s32
      %s52 = sphi 0, %s52
      %s54 = sphi 0, %s52
      %s55 = sphi 0, %s54
      %s69 = sphi 0, %s55
      %s73 = sphi 0, %s73
      %s75 = sphi 0, %s73
      %s76 = sphi 0, %s75
      %s90 = sphi 0, %s76
      %s94 = sphi 0, %s94
      %s96 = sphi 0, %s94
      %s97 = sphi 0, %s96
      %s111 = sphi 0, %s97
      %s115 = sphi 0, %s115
      %s117 = sphi 0, %s115
      %s118 = sphi 0, %s117
      %s132 = sphi 0, %s118
      %s136 = sphi 0, %s136
      %s138 = sphi 0, %s136
      %s139 = sphi 0, %s138
      %s153 = sphi 0, %s139
      %s157 = sphi 0, %s157
      %s159 = sphi 0, %s157
      %s160 = sphi 0, %s159
      %s174 = sphi 0, %s160
      %s180 = sphi 0, %s182
      %s183 = sphi 0, %s180
      %s184 = sphi 0, %s183
      %s200 = sphi 0, %s184
    $region4: #{tpu_custom_call.1} parent=1 // loop_header_branch
      %21 = sbr.rel (%p19) target = $region8
    $region5: #{tpu_custom_call.1} parent=1 // loop_body
      %s23 = ssub.s32 %s18, 1
      %s24 = ssub.s32 %s18, 2
      %s25 = sadd.s32 %s18, 1
      %s26 = ssub.s32 %s18, %s25
      %p27 = scmp.eq.s32.totalorder %s26, 0
      %s29 = sadd.s32 %s28, 1
      %s30 = scalar_select %p27, %s28, %s29
      %p33 = pneg %p27
      %p34 = scmp.eq.s32.totalorder %s18, 2
      %p35 = por %p33, %p34
      %p36 = scmp.ne.s32.totalorder %s28, %s31
      %p37 = scmp.eq.s32.totalorder %s18, 0
      %p38 = por %p36, %p37
      %p39 = scmp.ne.s32.totalorder %s28, %s31
      %p40 = scmp.eq.s32.totalorder %s23, 2
      %p41 = por %p39, %p40
      %p42 = scmp.ne.s32.totalorder %s31, %s32
      %p43 = scmp.eq.s32.totalorder %s23, 0
      %p44 = por %p42, %p43
      %p45 = scmp.ne.s32.totalorder %s31, %s32
      %p46 = scmp.eq.s32.totalorder %s24, 2
      %p47 = por %p45, %p46
      %p49 = scmp.ne.s32.totalorder %s32, %s48
      %p50 = scmp.eq.s32.totalorder %s24, 0
      %p51 = por %p49, %p50
      %s53 = sadd.s32 %s52, 1
      %p56 = scmp.eq.s32.totalorder %s18, 2
      %p57 = scmp.ne.s32.totalorder %s52, %s54
      %p58 = scmp.eq.s32.totalorder %s18, 0
      %p59 = por %p57, %p58
      %p60 = scmp.ne.s32.totalorder %s52, %s54
      %p61 = scmp.eq.s32.totalorder %s23, 2
      %p62 = por %p60, %p61
      %p63 = scmp.ne.s32.totalorder %s54, %s55
      %p64 = scmp.eq.s32.totalorder %s23, 0
      %p65 = por %p63, %p64
      %p66 = scmp.ne.s32.totalorder %s54, %s55
      %p67 = scmp.eq.s32.totalorder %s24, 2
      %p68 = por %p66, %p67
      %p70 = scmp.ne.s32.totalorder %s55, %s69
      %p71 = scmp.eq.s32.totalorder %s24, 0
      %p72 = por %p70, %p71
      %s74 = sadd.s32 %s73, 1
      %p77 = scmp.eq.s32.totalorder %s18, 2
      %p78 = scmp.ne.s32.totalorder %s73, %s75
      %p79 = scmp.eq.s32.totalorder %s18, 0
      %p80 = por %p78, %p79
      %p81 = scmp.ne.s32.totalorder %s73, %s75
      %p82 = scmp.eq.s32.totalorder %s23, 2
      %p83 = por %p81, %p82
      %p84 = scmp.ne.s32.totalorder %s75, %s76
      %p85 = scmp.eq.s32.totalorder %s23, 0
      %p86 = por %p84, %p85
      %p87 = scmp.ne.s32.totalorder %s75, %s76
      %p88 = scmp.eq.s32.totalorder %s24, 2
      %p89 = por %p87, %p88
      %p91 = scmp.ne.s32.totalorder %s76, %s90
      %p92 = scmp.eq.s32.totalorder %s24, 0
      %p93 = por %p91, %p92
      %s95 = sadd.s32 %s94, 1
      %p98 = scmp.eq.s32.totalorder %s18, 2
      %p99 = scmp.ne.s32.totalorder %s94, %s96
      %p100 = scmp.eq.s32.totalorder %s18, 0
      %p101 = por %p99, %p100
      %p102 = scmp.ne.s32.totalorder %s94, %s96
      %p103 = scmp.eq.s32.totalorder %s23, 2
      %p104 = por %p102, %p103
      %p105 = scmp.ne.s32.totalorder %s96, %s97
      %p106 = scmp.eq.s32.totalorder %s23, 0
      %p107 = por %p105, %p106
      %p108 = scmp.ne.s32.totalorder %s96, %s97
      %p109 = scmp.eq.s32.totalorder %s24, 2
      %p110 = por %p108, %p109
      %p112 = scmp.ne.s32.totalorder %s97, %s111
      %p113 = scmp.eq.s32.totalorder %s24, 0
      %p114 = por %p112, %p113
      %s116 = sadd.s32 %s115, 1
      %p119 = scmp.eq.s32.totalorder %s18, 2
      %p120 = scmp.ne.s32.totalorder %s115, %s117
      %p121 = scmp.eq.s32.totalorder %s18, 0
      %p122 = por %p120, %p121
      %p123 = scmp.ne.s32.totalorder %s115, %s117
      %p124 = scmp.eq.s32.totalorder %s23, 2
      %p125 = por %p123, %p124
      %p126 = scmp.ne.s32.totalorder %s117, %s118
      %p127 = scmp.eq.s32.totalorder %s23, 0
      %p128 = por %p126, %p127
      %p129 = scmp.ne.s32.totalorder %s117, %s118
      %p130 = scmp.eq.s32.totalorder %s24, 2
      %p131 = por %p129, %p130
      %p133 = scmp.ne.s32.totalorder %s118, %s132
      %p134 = scmp.eq.s32.totalorder %s24, 0
      %p135 = por %p133, %p134
      %s137 = sadd.s32 %s136, 1
      %p140 = scmp.eq.s32.totalorder %s18, 2
      %p141 = scmp.ne.s32.totalorder %s136, %s138
      %p142 = scmp.eq.s32.totalorder %s18, 0
      %p143 = por %p141, %p142
      %p144 = scmp.ne.s32.totalorder %s136, %s138
      %p145 = scmp.eq.s32.totalorder %s23, 2
      %p146 = por %p144, %p145
      %p147 = scmp.ne.s32.totalorder %s138, %s139
      %p148 = scmp.eq.s32.totalorder %s23, 0
      %p149 = por %p147, %p148
      %p150 = scmp.ne.s32.totalorder %s138, %s139
      %p151 = scmp.eq.s32.totalorder %s24, 2
      %p152 = por %p150, %p151
      %p154 = scmp.ne.s32.totalorder %s139, %s153
      %p155 = scmp.eq.s32.totalorder %s24, 0
      %p156 = por %p154, %p155
      %s158 = sadd.s32 %s157, 1
      %p161 = scmp.eq.s32.totalorder %s18, 2
      %p162 = scmp.ne.s32.totalorder %s157, %s159
      %p163 = scmp.eq.s32.totalorder %s18, 0
      %p164 = por %p162, %p163
      %p165 = scmp.ne.s32.totalorder %s157, %s159
      %p166 = scmp.eq.s32.totalorder %s23, 2
      %p167 = por %p165, %p166
      %p168 = scmp.ne.s32.totalorder %s159, %s160
      %p169 = scmp.eq.s32.totalorder %s23, 0
      %p170 = por %p168, %p169
      %p171 = scmp.ne.s32.totalorder %s159, %s160
      %p172 = scmp.eq.s32.totalorder %s24, 2
      %p173 = por %p171, %p172
      %p175 = scmp.ne.s32.totalorder %s160, %s174
      %p176 = scmp.eq.s32.totalorder %s24, 0
      %p177 = por %p175, %p176
      %s178 = ssub.s32 %s18, %s25
      %p179 = scmp.eq.s32.totalorder %s178, 0
      %s181 = sadd.s32 %s180, 1
      %s182 = scalar_select %p179, %s180, %s181
      %p185 = pneg %p179
      %p186 = scmp.eq.s32.totalorder %s18, 2
      %p187 = por %p185, %p186
      %p188 = scmp.ne.s32.totalorder %s180, %s183
      %p189 = scmp.eq.s32.totalorder %s18, 0
      %p190 = por %p188, %p189
      %p191 = scmp.ne.s32.totalorder %s180, %s183
      %p192 = scmp.eq.s32.totalorder %s23, 2
      %p193 = por %p191, %p192
      %p194 = scmp.ne.s32.totalorder %s183, %s184
      %p195 = scmp.eq.s32.totalorder %s23, 0
      %p196 = por %p194, %p195
      %p197 = scmp.ne.s32.totalorder %s183, %s184
      %p198 = scmp.eq.s32.totalorder %s24, 2
      %p199 = por %p197, %p198
      %p201 = scmp.ne.s32.totalorder %s184, %s200
      %p202 = scmp.eq.s32.totalorder %s24, 0
      %p203 = por %p201, %p202
      %p204 = scmp.le.s32.totalorder 1, %s18
      %p205 = scmp.lt.s32.totalorder %s18, 4
      %p206 = pnand %p204, %p205
      %p207 = pneg %p206
      // Predicated region
      $region9: #{tpu_custom_call.1} parent=5 // pred_check
        _
      $region10: #{tpu_custom_call.1} parent=5 // pred_check_branch
        %209 = sbr.rel (%p206) target = $region12
      $region11: #{tpu_custom_call.1} parent=5 // pred_region
        %s210 = ssub.s32 %s18, 1
        // Predicated region
        $region13: #{tpu_custom_call.1} parent=11 // pred_check
          %p211 = pneg %p65
        $region14: #{tpu_custom_call.1} parent=11 // pred_check_branch
          %213 = sbr.rel (%p211) target = $region16
        $region15: #{tpu_custom_call.1} parent=11 // pred_region
          _
        $region16: #{tpu_custom_call.1} parent=11 // pred_fallthru
          _
        // Predicated region
        $region17: #{tpu_custom_call.1} parent=11 // pred_check
          %p214 = pneg %p86
        $region18: #{tpu_custom_call.1} parent=11 // pred_check_branch
          %216 = sbr.rel (%p214) target = $region20
        $region19: #{tpu_custom_call.1} parent=11 // pred_region
          _
        $region20: #{tpu_custom_call.1} parent=11 // pred_fallthru
          _
        // Predicated region
        $region21: #{tpu_custom_call.1} parent=11 // pred_check
          %p217 = pneg %p107
        $region22: #{tpu_custom_call.1} parent=11 // pred_check_branch
          %219 = sbr.rel (%p217) target = $region24
        $region23: #{tpu_custom_call.1} parent=11 // pred_region
          _
        $region24: #{tpu_custom_call.1} parent=11 // pred_fallthru
          _
        // Predicated region
        $region25: #{tpu_custom_call.1} parent=11 // pred_check
          %p220 = pneg %p128
        $region26: #{tpu_custom_call.1} parent=11 // pred_check_branch
          %222 = sbr.rel (%p220) target = $region28
        $region27: #{tpu_custom_call.1} parent=11 // pred_region
          _
        $region28: #{tpu_custom_call.1} parent=11 // pred_fallthru
          _
        // Predicated region
        $region29: #{tpu_custom_call.1} parent=11 // pred_check
          %p223 = pneg %p149
        $region30: #{tpu_custom_call.1} parent=11 // pred_check_branch
          %225 = sbr.rel (%p223) target = $region32
        $region31: #{tpu_custom_call.1} parent=11 // pred_region
          _
        $region32: #{tpu_custom_call.1} parent=11 // pred_fallthru
          _
        // Predicated region
        $region33: #{tpu_custom_call.1} parent=11 // pred_check
          %p226 = pneg %p170
        $region34: #{tpu_custom_call.1} parent=11 // pred_check_branch
          %228 = sbr.rel (%p226) target = $region36
        $region35: #{tpu_custom_call.1} parent=11 // pred_region
          _
        $region36: #{tpu_custom_call.1} parent=11 // pred_fallthru
          _
      $region12: #{tpu_custom_call.1} parent=5 // pred_fallthru
        _
      %p229 = scmp.lt.s32.totalorder %s18, 3
      // Predicated region
      $region37: #{tpu_custom_call.1} parent=5 // pred_check
        %p230 = pneg %p229
      $region38: #{tpu_custom_call.1} parent=5 // pred_check_branch
        %232 = sbr.rel (%p230) target = $region40
      $region39: #{tpu_custom_call.1} parent=5 // pred_region
        // Predicated region
        $region41: #{tpu_custom_call.1} parent=39 // pred_check
          %p233 = pneg %p38
        $region42: #{tpu_custom_call.1} parent=39 // pred_check_branch
          %235 = sbr.rel (%p233) target = $region44
        $region43: #{tpu_custom_call.1} parent=39 // pred_region
          %s236 = sand.u32 %s28, 1
          %s237 = sand.u32 %s28, 1
          %s238 = smul.addr %s237, 8
          %s239 = scalar_lea.vmem [#allocation3], %s238
          %s240 = smul.addr %s18, 4
          %s241 = scalar_lea.vmem %s0, %s240
          // Predicated region
          $region45: #{tpu_custom_call.1} parent=43 // pred_check
            _
          $region46: #{tpu_custom_call.1} parent=43 // pred_check_branch
            %243 = sbr.rel (0) target = $region48
          $region47: #{tpu_custom_call.1} parent=43 // pred_region
            // Predicated region
            $region49: #{tpu_custom_call.1} parent=47 // pred_check
              _
            $region50: #{tpu_custom_call.1} parent=47 // pred_check_branch
              %245 = sbr.rel target = $region52
            $region51: #{tpu_custom_call.1} parent=47 // pred_region
              // Predicated region
              $region64: #{tpu_custom_call.1} parent=51 // pred_check
                _
              $region65: #{tpu_custom_call.1} parent=51 // pred_check_branch
                %262 = sbr.rel (0) target = $region67
              $region66: #{tpu_custom_call.1} parent=51 // pred_region
                loop: start=0, step=1, limit=1
                $region68: #{tpu_custom_call.1} parent=66 // loop_pre_header
                  _
                $region69: #{tpu_custom_call.1} parent=66 // loop_header
                  %s264 = sphi 0, %s268
                  %p265 = scmp.ge.s32.totalorder %s264, 1
                  %s269 = sphi %s241, %s241
                  %s270 = sphi %s239, %s239
                $region70: #{tpu_custom_call.1} parent=66 // loop_header_branch
                  %267 = sbr.rel (%p265) target = $region74
                $region71: #{tpu_custom_call.1} parent=66 // loop_body
                  _
                $region72: #{tpu_custom_call.1} parent=66 // loop_footer
                  %s268 = sadd.s32 1, %s264
                $region73: #{tpu_custom_call.1} parent=66 // loop_footer_branch
                  %263 = sbr.rel target = $region69
                $region74: #{tpu_custom_call.1} parent=66 // loop_exit
                  _
                loop: start=0, step=1, limit=1
                $region75: #{tpu_custom_call.1} parent=66 // loop_pre_header
                  _
                $region76: #{tpu_custom_call.1} parent=66 // loop_header
                  %s273 = sphi 0, %s277
                  %p274 = scmp.ge.s32.totalorder %s273, 1
                  %s278 = sphi %s241, %s241
                  %s279 = sphi %s239, %s239
                $region77: #{tpu_custom_call.1} parent=66 // loop_header_branch
                  %276 = sbr.rel (%p274) target = $region81
                $region78: #{tpu_custom_call.1} parent=66 // loop_body
                  %v280 = vld [vmem:[%s278] sm:$0xf]
                  %281 = vst [vmem:[%s279] sm:$0xf] %v280
                  %v282 = vld [vmem:[%s278 + $0xc] sm:$0xf]
                  %283 = vst [vmem:[%s279 + $0x4] sm:$0xf] %v282
                $region79: #{tpu_custom_call.1} parent=66 // loop_footer
                  %s277 = sadd.s32 1, %s273
                $region80: #{tpu_custom_call.1} parent=66 // loop_footer_branch
                  %272 = sbr.rel target = $region76
                $region81: #{tpu_custom_call.1} parent=66 // loop_exit
                  _
              $region67: #{tpu_custom_call.1} parent=51 // pred_fallthru
                _
            $region52: #{tpu_custom_call.1} parent=47 // pred_fallthru
              _
            // Predicated region
            $region53: #{tpu_custom_call.1} parent=47 // pred_check
              _
            $region54: #{tpu_custom_call.1} parent=47 // pred_check_branch
              %247 = sbr.rel (0) target = $region56
            $region55: #{tpu_custom_call.1} parent=47 // pred_region
              loop: start=0, step=1, limit=1
              $region57: #{tpu_custom_call.1} parent=55 // loop_pre_header
                _
              $region58: #{tpu_custom_call.1} parent=55 // loop_header
                %s250 = sphi 0, %s254
                %p251 = scmp.ge.s32.totalorder %s250, 1
                %s255 = sphi %s241, %s241
                %s256 = sphi %s239, %s239
              $region59: #{tpu_custom_call.1} parent=55 // loop_header_branch
                %253 = sbr.rel (%p251) target = $region63
              $region60: #{tpu_custom_call.1} parent=55 // loop_body
                %v257 = vld [vmem:[%s255] sm:$0xf]
                %258 = vst [vmem:[%s256] sm:$0xf] %v257
                %v259 = vld [vmem:[%s255 + $0xc] sm:$0xf]
                %260 = vst [vmem:[%s256 + $0x4] sm:$0xf] %v259
              $region61: #{tpu_custom_call.1} parent=55 // loop_footer
                %s254 = sadd.s32 1, %s250
              $region62: #{tpu_custom_call.1} parent=55 // loop_footer_branch
                %249 = sbr.rel target = $region58
              $region63: #{tpu_custom_call.1} parent=55 // loop_exit
                _
            $region56: #{tpu_custom_call.1} parent=47 // pred_fallthru
              _
          $region48: #{tpu_custom_call.1} parent=43 // pred_fallthru
            _
          %284 = vnop
        $region44: #{tpu_custom_call.1} parent=39 // pred_fallthru
          _
      $region40: #{tpu_custom_call.1} parent=5 // pred_fallthru
        _
      %p285 = scmp.le.s32.totalorder 1, %s18
      %p286 = scmp.lt.s32.totalorder %s18, 4
      %p287 = pnand %p285, %p286
      %p288 = pneg %p287
      // Predicated region
      $region82: #{tpu_custom_call.1} parent=5 // pred_check
        _
      $region83: #{tpu_custom_call.1} parent=5 // pred_check_branch
        %290 = sbr.rel (%p287) target = $region85
      $region84: #{tpu_custom_call.1} parent=5 // pred_region
        %s291 = ssub.s32 %s18, 1
        %s292 = sand.u32 %s31, 1
        %s293 = sand.u32 %s31, 1
        %s294 = smul.addr %s293, 8
        %s295 = scalar_lea.vmem [#allocation3], %s294
        // Predicated region
        $region86: #{tpu_custom_call.1} parent=84 // pred_check
          %p296 = pneg %p44
        $region87: #{tpu_custom_call.1} parent=84 // pred_check_branch
          %298 = sbr.rel (%p296) target = $region89
        $region88: #{tpu_custom_call.1} parent=84 // pred_region
          _
        $region89: #{tpu_custom_call.1} parent=84 // pred_fallthru
          _
        %s299 = sand.u32 %s31, 1
        %s300 = sand.u32 %s31, 1
        %s301 = smul.addr %s300, 8
        %s302 = scalar_lea.vmem [#allocation3], %s301
        %p303 = pneg %p44
        %p304 = pneg %p41
        %p305 = pneg %p65
        %p306 = pneg %p62
        %p307 = pneg %p86
        %p308 = pneg %p83
        %p309 = pneg %p107
        %p310 = pneg %p104
        %p311 = pneg %p128
        %p312 = pneg %p125
        %p313 = pneg %p149
        %p314 = pneg %p146
        %p315 = pneg %p170
        %p316 = pneg %p167
        %p317 = pneg %p196
        %p318 = pneg %p193
        %s319 = sand.u32 %s183, 1
        %s320 = scalar_lea.sflag [#allocation5], %s319
        %s321 = sand.u32 %s183, 1
        %s322 = scalar_lea.vmem [#allocation4], %s321
        %v324 = vld [vmem:[%s295] sm:$0xf]
        %v325 = vld [vmem:[%s295 + $0x4] sm:$0xf]
        %v326 = vld [vmem:[%s1] sm:$0xf]
        %v327 = vld [vmem:[%s1 + $0x4] sm:$0xf]
        %v328 = vld [vmem:[%s1 + $0x8] sm:$0xf]
        %v329 = vld [vmem:[%s1 + $0xc] sm:$0xf]
        %v330 = vld [vmem:[%s2] sm:$0xff]
        %v331 = vld [vmem:[%s2 + $0x8] sm:$0xff]
        %v332 = vld [vmem:[%s2 + $0x10] sm:$0xff]
        %v333 = vld [vmem:[%s2 + $0x18] sm:$0xff]
        %335 = vset.pattern.permute.xlu0 0
        %336 = vperm.xlu0 %335, %v330
        %v337 = vpop.permute.xlu0 %336
        %340 = vset.pattern.permute.xlu0 0
        %341 = vperm.xlu0 %340, %v331
        %v342 = vpop.permute.xlu0 %341
        %345 = vset.pattern.permute.xlu0 0
        %346 = vperm.xlu0 %345, %v332
        %v347 = vpop.permute.xlu0 %346
        %350 = vset.pattern.permute.xlu0 0
        %351 = vperm.xlu0 %350, %v333
        %v352 = vpop.permute.xlu0 %351
        %v358 = vunpack.c.l.b16 %v326
        %v359 = vunpack.c.l.b16 %v327
        %v360 = vunpack.c.l.b16 %v328
        %v361 = vunpack.c.l.b16 %v329
        %v362 = vpack.c.b16 %v359, %v358
        %v363 = vpack.c.b16 %v361, %v360
        %v366 = vunpack.c.l.b16 %v324
        %v367 = vunpack.c.l.b16 %v325
        %v368 = vpack.c.b16 %v367, %v366
        %vm370 = vcmask 130048
        %v372 = vsel %vm370, %v362, 0
        %v375 = vsel %vm370, %v363, 0
        %377 = vmatprep.subr.bf16.mxu0 0
        %378 = vmatpush1.bf16.msra.mxu0 %v368
        %379 = vmatprep.subr.bf16.mxu0 0
        %380 = vmatpush1.bf16.msra.mxu0 0
        %381 = vmatprep.subr.bf16.mxu0 0
        %382 = vmatpush1.bf16.msra.mxu0 0
        %383 = vmatprep.subr.bf16.mxu0 0
        %384 = vmatpush1.bf16.msra.mxu0 0
        %385 = vmatprep.subr.bf16.mxu0 0
        %386 = vmatpush1.bf16.msra.mxu0 0
        %387 = vmatprep.subr.bf16.mxu0 0
        %388 = vmatpush1.bf16.msra.mxu0 0
        %389 = vmatprep.subr.bf16.mxu0 0
        %390 = vmatpush1.bf16.msra.mxu0 0
        %391 = vmatprep.subr.bf16.mxu0 0
        %392 = vmatpush1.bf16.msra.mxu0 0
        %393 = vmatprep.subr.bf16.mxu0 0
        %394 = vmatpush1.bf16.msra.mxu0 0
        %395 = vmatprep.subr.bf16.mxu0 0
        %396 = vmatpush1.bf16.msra.mxu0 0
        %397 = vmatprep.subr.bf16.mxu0 0
        %398 = vmatpush1.bf16.msra.mxu0 0
        %399 = vmatprep.subr.bf16.mxu0 0
        %400 = vmatpush1.bf16.msra.mxu0 0
        %401 = vmatprep.subr.bf16.mxu0 0
        %402 = vmatpush1.bf16.msra.mxu0 0
        %403 = vmatprep.subr.bf16.mxu0 0
        %404 = vmatpush1.bf16.msra.mxu0 0
        %405 = vmatprep.subr.bf16.mxu0 0
        %406 = vmatpush1.bf16.msra.mxu0 0
        %407 = vmatprep.subr.bf16.mxu0 0
        %408 = vmatpush1.bf16.msra.mxu0 0
        %409 = vmatprep.mubr.bf16.mxu0 0
        %410 = vmatmul.mubr.bf16.gmra.mrb[0].mxu0 %v372
        %v411 = vpop.f32.mrb[0].mxu0
        %v412 = vadd.f32 %v337, %v411
        %v413 = vpop.f32.mrb[0].mxu0
        %v414 = vpop.f32.mrb[0].mxu0
        %v415 = vadd.f32 %v342, %v414
        %v416 = vpop.f32.mrb[0].mxu0
        %417 = vmatprep.mubr.bf16.mxu0 0
        %418 = vmatmul.mubr.bf16.gmra.mrb[0].mxu0 %v375
        %v419 = vpop.f32.mrb[0].mxu0
        %v420 = vadd.f32 %v347, %v419
        %v421 = vpop.f32.mrb[0].mxu0
        %v422 = vpop.f32.mrb[0].mxu0
        %v423 = vadd.f32 %v352, %v422
        %v424 = vpop.f32.mrb[0].mxu0
        %425 = vdwg.mxu0
        %v426 = vmax.f32 %v412, 0.0
        %v427 = vmax.f32 %v415, 0.0
        %v428 = vmax.f32 %v420, 0.0
        %v429 = vmax.f32 %v423, 0.0
        %v430 = vld [vmem:[%s3] sm:$0xf]
        %v431 = vld [vmem:[%s3 + $0x4] sm:$0xf]
        %v432 = vpack.c.bf16 %v427, %v426
        %v433 = vpack.c.bf16 %v429, %v428
        %v434 = vld [vmem:[%s4] sm:$0xff]
        %v435 = vld [vmem:[%s4 + $0x8] sm:$0xff]
        %437 = vset.pattern.permute.xlu0 0
        %438 = vperm.xlu0 %437, %v434
        %v439 = vpop.permute.xlu0 %438
        %442 = vset.pattern.permute.xlu0 0
        %443 = vperm.xlu0 %442, %v435
        %v444 = vpop.permute.xlu0 %443
        %v448 = vunpack.c.l.b16 %v430
        %v449 = vunpack.c.l.b16 %v431
        %v450 = vpack.c.b16 %v449, %v448
        %vm451 = vcmask 261120
        %v453 = vsel %vm451, %v450, 0
        %455 = vmatprep.subr.bf16.mxu0 0
        %456 = vmatpush1.bf16.msra.mxu0 %v432
        %457 = vmatprep.subr.bf16.mxu0 0
        %458 = vmatpush1.bf16.msra.mxu0 %v433
        %459 = vmatprep.subr.bf16.mxu0 0
        %460 = vmatpush1.bf16.msra.mxu0 0
        %461 = vmatprep.subr.bf16.mxu0 0
        %462 = vmatpush1.bf16.msra.mxu0 0
        %463 = vmatprep.subr.bf16.mxu0 0
        %464 = vmatpush1.bf16.msra.mxu0 0
        %465 = vmatprep.subr.bf16.mxu0 0
        %466 = vmatpush1.bf16.msra.mxu0 0
        %467 = vmatprep.subr.bf16.mxu0 0
        %468 = vmatpush1.bf16.msra.mxu0 0
        %469 = vmatprep.subr.bf16.mxu0 0
        %470 = vmatpush1.bf16.msra.mxu0 0
        %471 = vmatprep.subr.bf16.mxu0 0
        %472 = vmatpush1.bf16.msra.mxu0 0
        %473 = vmatprep.subr.bf16.mxu0 0
        %474 = vmatpush1.bf16.msra.mxu0 0
        %475 = vmatprep.subr.bf16.mxu0 0
        %476 = vmatpush1.bf16.msra.mxu0 0
        %477 = vmatprep.subr.bf16.mxu0 0
        %478 = vmatpush1.bf16.msra.mxu0 0
        %479 = vmatprep.subr.bf16.mxu0 0
        %480 = vmatpush1.bf16.msra.mxu0 0
        %481 = vmatprep.subr.bf16.mxu0 0
        %482 = vmatpush1.bf16.msra.mxu0 0
        %483 = vmatprep.subr.bf16.mxu0 0
        %484 = vmatpush1.bf16.msra.mxu0 0
        %485 = vmatprep.subr.bf16.mxu0 0
        %486 = vmatpush1.bf16.msra.mxu0 0
        %487 = vmatprep.mubr.bf16.mxu0 0
        %488 = vmatmul.mubr.bf16.gmra.mrb[0].mxu0 %v453
        %v489 = vpop.f32.mrb[0].mxu0
        %v490 = vadd.f32 %v439, %v489
        %v491 = vpop.f32.mrb[0].mxu0
        %v492 = vpop.f32.mrb[0].mxu0
        %v493 = vadd.f32 %v444, %v492
        %v494 = vpop.f32.mrb[0].mxu0
        %495 = vdwg.mxu0
        %v496 = vmax.f32 %v490, 0.0
        %v497 = vmax.f32 %v493, 0.0
        %v498 = vld [vmem:[%s5] sm:$0xff]
        %v499 = vld [vmem:[%s5 + $0x8] sm:$0xff]
        %501 = vset.pattern.permute.xlu0 0
        %502 = vperm.xlu0 %501, %v498
        %v503 = vpop.permute.xlu0 %502
        %506 = vset.pattern.permute.xlu0 0
        %507 = vperm.xlu0 %506, %v499
        %v508 = vpop.permute.xlu0 %507
        %v510 = vmul.f32 %v496, %v503
        %v511 = vmul.f32 %v497, %v508
        %v512 = vadd.f32 %v510, %v511
        %v513 = vrot.slane %v512, 4
        %v514 = vadd.f32 %v512, %v513
        %v515 = vrot.slane %v514, 2
        %v516 = vadd.f32 %v514, %v515
        %v517 = vrot.slane %v516, 1
        %v518 = vadd.f32 %v516, %v517
        %v519 = vld [vmem:[#allocation2] sm:$0x1]
        %521 = vset.pattern.permute.xlu0 0
        %522 = vperm.xlu0 %521, %v519
        %v523 = vpop.permute.xlu0 %522
        %v525 = vlaneseq
        %v526 = vshrl.u32 %v525, 7
        %v527 = vsub.s32 0, %v526
        %v528 = vrot.slane %v523, %v527
        %v529 = vadd.f32 %v518, %v528
        %530 = vst [vmem:[%s322] sm:$0x1] %v529
        %s531 = sand.u32 %s183, 1
        %s532 = scalar_lea.sflag [#allocation5], %s531
        %s533 = sand.u32 %s183, 1
        %s534 = scalar_lea.vmem [#allocation4], %s533
        // Predicated region
        $region90: #{tpu_custom_call.1} parent=84 // pred_check
          %p535 = pneg %p193
        $region91: #{tpu_custom_call.1} parent=84 // pred_check_branch
          %537 = sbr.rel (%p535) target = $region93
        $region92: #{tpu_custom_call.1} parent=84 // pred_region
          %s539 = ssub.s32 16, 16
          %540 = vsyncadd %s532, %s539
          %s541 = smul.addr %s23, 16
          %s542 = scalar_lea.hbm %s7, %s541
          %s544 = sshll.u32 %s534, 4
          %s545 = int_to_ptr.vmem [resolvable:$true] %s544
          %547 = dma.vmem_to_hbm [thread:$0]  %s545, 16, %s542, %s532
        $region93: #{tpu_custom_call.1} parent=84 // pred_fallthru
          _
      $region85: #{tpu_custom_call.1} parent=5 // pred_fallthru
        _
      %p548 = scmp.le.s32.totalorder 2, %s18
      // Predicated region
      $region94: #{tpu_custom_call.1} parent=5 // pred_check
        %p549 = pneg %p548
      $region95: #{tpu_custom_call.1} parent=5 // pred_check_branch
        %551 = sbr.rel (%p549) target = $region97
      $region96: #{tpu_custom_call.1} parent=5 // pred_region
        %s552 = ssub.s32 %s18, 2
        // Predicated region
        $region98: #{tpu_custom_call.1} parent=96 // pred_check
          %p553 = pneg %p199
        $region99: #{tpu_custom_call.1} parent=96 // pred_check_branch
          %555 = sbr.rel (%p553) target = $region101
        $region100: #{tpu_custom_call.1} parent=96 // pred_region
          %s556 = sand.u32 %s184, 1
          %s557 = scalar_lea.sflag [#allocation5], %s556
          %s558 = sand.u32 %s184, 1
          %s559 = scalar_lea.vmem [#allocation4], %s558
          %560 = dma.done %s557, 16
        $region101: #{tpu_custom_call.1} parent=96 // pred_fallthru
          _
      $region97: #{tpu_custom_call.1} parent=5 // pred_fallthru
        _
    $region6: #{tpu_custom_call.1} parent=1 // loop_footer
      %s22 = sadd.s32 1, %s18
    $region7: #{tpu_custom_call.1} parent=1 // loop_footer_branch
      %17 = sbr.rel target = $region3
    $region8: #{tpu_custom_call.1} parent=1 // loop_exit
      _
    %561 = vsyncpa [#allocation5], 1
    %s562 = scalar_lea.sflag [#allocation5], 1
    %563 = vsyncpa %s562, 1

</llo_original>
